<compile_context>
chip_gen: v7x
topology: tpu7x:2x2x1
jax: 0.10.0
libtpu: 0.0.40
codegen_flags: <defaults>
</compile_context>

<pallas_src>
import functools

import jax
import jax.numpy as jnp
from jax.experimental import pallas as pl
from jax.experimental.pallas import tpu as pltpu

EPS = 1e-5


def _round_up(v, m):
    return (v + m - 1) // m * m


def _fused_convblk_kernel(xph_ref, w_ref, par_ref, out_ref,
                          y_all, sum_ref, sq_ref, *,
                          d_taps, sc, l_out, inv_count):
    """Phase 0 (ph==0): conv + bias + ReLU into VMEM-resident y, accumulate BN stats.
    Phase 1 (ph==1): finalize scale/shift and write normalized (1, C_out, L_out) block."""
    ph = pl.program_id(0)   # 0: conv+relu+stats, 1: batchnorm + output write
    b = pl.program_id(1)    # batch sample index

    @pl.when(jnp.logical_and(ph == 0, b == 0))
    def _init():
        sum_ref[...] = jnp.zeros_like(sum_ref)
        sq_ref[...] = jnp.zeros_like(sq_ref)

    @pl.when(ph == 0)
    def _conv_relu_stats():
        xs = xph_ref[0]                       # (SC, M) bf16, phase-decomposed sample
        w = w_ref[...]                        # (C_out, D*SC) bf16, (d, s, c)-packed weight
        bias = par_ref[:, 0:1]                # (C_out, 1) f32

        # In-kernel "im2col": D static unit-stride shifts, each a skinny MXU matmul.
        acc = jnp.dot(w[:, 0:sc], xs[:, 0:l_out],
                      preferred_element_type=jnp.float32)
        for d in range(1, d_taps):
            acc = acc + jnp.dot(w[:, d * sc:(d + 1) * sc], xs[:, d:d + l_out],
                                preferred_element_type=jnp.float32)

        y = jnp.maximum(acc + bias, 0.0)      # conv bias + ReLU, f32 (C_out, L_out)
        y_all[b] = y                          # VMEM-resident; never touches HBM
        sum_ref[...] = sum_ref[...] + jnp.sum(y, axis=-1, keepdims=True)
        sq_ref[...] = sq_ref[...] + jnp.sum(y * y, axis=-1, keepdims=True)

    @pl.when(ph == 1)
    def _bn_write():
        gamma = par_ref[:, 1:2]
        beta = par_ref[:, 2:3]
        mean = sum_ref[...] * inv_count
        var = jnp.maximum(sq_ref[...] * inv_count - mean * mean, 0.0)  # biased batch var
        scale = gamma * jax.lax.rsqrt(var + EPS)
        shift = beta - mean * scale
        out_ref[0] = y_all[b] * scale + shift  # direct (N, C_out, L_out) layout write


def conv_blk_forward(x, weight, bias, gamma, beta, *, stride=3):
    """x: (N, C_in, L) f32. weight: (C_out, C_in, K). Returns (N, C_out, L_out) f32."""
    n, c_in, l = x.shape
    c_out, c_in_w, k = weight.shape
    assert c_in_w == c_in
    l_out = (l - k) // stride + 1
    assert l_out >= 1

    sc = stride * c_in                 # rows per shift in the phase-decomposed layout
    d_taps = -(-k // stride)           # ceil(K / stride) unit-stride shifts
    m = -(-l // stride)                # phase length = ceil(L / stride)
    l_pad = m * stride
    assert l_out + d_taps - 1 <= m     # every in-kernel shifted slice stays in bounds

    # ---- Phase decomposition of x (same total size as x, no im2col expansion) ----
    # x_ph[n, s*C_in + c, m] = x[n, c, m*stride + s]
    xp = jnp.pad(x, ((0, 0), (0, 0), (0, l_pad - l)))
    x_ph = jnp.transpose(xp.reshape(n, c_in, m, stride), (0, 3, 1, 2)).reshape(n, sc, m)
    x_ph = x_ph.astype(jnp.bfloat16)

    # ---- Pack conv weight to match the (d, s, c) tap order; zero-pad taps >= K ----
    k_pad = d_taps * stride
    w_k = jnp.pad(weight, ((0, 0), (0, 0), (0, k_pad - k)))
    w_pack = jnp.transpose(w_k.reshape(c_out, c_in, d_taps, stride), (0, 2, 3, 1))
    w_pack = w_pack.reshape(c_out, d_taps * sc).astype(jnp.bfloat16)

    # ---- Pack bias / gamma / beta into one tiny (C_out, 3) f32 block ----
    params = jnp.stack([bias, gamma, beta], axis=1).astype(jnp.float32)

    # ---- VMEM budget for the fused (resident-y) path, sized for v7x (64 MiB physical) ----
    f32b, bf16b = 4, 2
    lane = lambda v: _round_up(v, 128)
    y_resident = n * _round_up(c_out, 8) * lane(l_out) * f32b
    x_blocks = 2 * _round_up(sc, 16) * lane(m) * bf16b
    w_blocks = 2 * _round_up(c_out, 16) * lane(d_taps * sc) * bf16b
    par_blocks = 2 * _round_up(c_out, 8) * lane(3) * f32b
    out_blocks = 2 * _round_up(c_out, 8) * lane(l_out) * f32b
    vmem_needed = y_resident + x_blocks + w_blocks + par_blocks + out_blocks + (1 << 20)
    assert vmem_needed <= 40 * 1024 * 1024, (
        f"resident-y footprint {vmem_needed} B exceeds the fused-path VMEM budget")
    # TODO(synk): two-pass (HBM bf16 intermediate) fallback when the assert above would fire.
    vmem_limit = int(min(max(2 * vmem_needed, 32 * 1024 * 1024), 48 * 1024 * 1024))

    cost = pl.CostEstimate(
        flops=2 * n * l_out * c_out * c_in * k + 4 * n * l_out * c_out,
        transcendentals=2 * n * c_out,
        bytes_accessed=x_ph.size * bf16b + w_pack.size * bf16b
        + params.size * f32b + n * c_out * l_out * f32b,
    )

    out = pl.pallas_call(
        functools.partial(_fused_convblk_kernel, d_taps=d_taps, sc=sc,
                          l_out=l_out, inv_count=1.0 / float(n * l_out)),
        out_shape=jax.ShapeDtypeStruct((n, c_out, l_out), jnp.float32),
        grid=(2, n),
        in_specs=[
            # phase 1 never reads x -> collapse to block 0 so it is not re-fetched.
            pl.BlockSpec((1, sc, m), lambda ph, b: (b * (1 - ph), 0, 0)),
            pl.BlockSpec((c_out, d_taps * sc), lambda ph, b: (0, 0)),
            pl.BlockSpec((c_out, 3), lambda ph, b: (0, 0)),
        ],
        # phase 0 maps every step to block 0; each output block is written (phase 1)
        # before its single HBM writeback.
        out_specs=pl.BlockSpec((1, c_out, l_out), lambda ph, b: (b * ph, 0, 0)),
        scratch_shapes=[
            pltpu.VMEM((n, c_out, l_out), jnp.float32),   # resident y (never hits HBM)
            pltpu.VMEM((c_out, 1), jnp.float32),          # per-channel sum
            pltpu.VMEM((c_out, 1), jnp.float32),          # per-channel sum of squares
        ],
        compiler_params=pltpu.CompilerParams(
            dimension_semantics=("arbitrary", "arbitrary"),
            vmem_limit_bytes=vmem_limit,
        ),
        cost_estimate=cost,
    )(x_ph, w_pack, params)
    return out


def _reference(x, weight, bias, gamma, beta, stride):
    """Pure-JAX f32 reference of ConvBlk forward (train-mode BN)."""
    n, c_in, l = x.shape
    c_out, _, k = weight.shape
    l_out = (l - k) // stride + 1
    cols = jnp.arange(l_out)[:, None] * stride + jnp.arange(k)[None, :]
    patches = x[:, :, cols]                                       # (N, C_in, L_out, K)
    y = jnp.einsum("nclk,ock->nol", patches, weight) + bias[None, :, None]
    y = jnp.maximum(y, 0.0)
    mean = jnp.mean(y, axis=(0, 2), keepdims=True)
    var = jnp.mean((y - mean) ** 2, axis=(0, 2), keepdims=True)
    y = (y - mean) * jax.lax.rsqrt(var + EPS)
    return y * gamma[None, :, None] + beta[None, :, None]


if __name__ == "__main__":
    # Small shapes consistent with ConvBlk(ch_in=4, ch_out=8, k_size=20, stride=3)
    N, C_IN, L = 2, 4, 64
    C_OUT, K, STRIDE = 8, 20, 3

    key = jax.random.PRNGKey(0)
    kx, kw, kb, kg, kbe = jax.random.split(key, 5)

    x = jax.random.normal(kx, (N, C_IN, L), dtype=jnp.float32)
    weight = jax.random.normal(kw, (C_OUT, C_IN, K), dtype=jnp.float32) * 0.1
    bias = jax.random.normal(kb, (C_OUT,), dtype=jnp.float32) * 0.1
    gamma = 1.0 + 0.1 * jax.random.normal(kg, (C_OUT,), dtype=jnp.float32)
    beta = 0.1 * jax.random.normal(kbe, (C_OUT,), dtype=jnp.float32)

    y = conv_blk_forward(x, weight, bias, gamma, beta, stride=STRIDE)
    y = jax.block_until_ready(y)

    L_OUT = (L - K) // STRIDE + 1
    assert y.shape == (N, C_OUT, L_OUT)

    # Loose tolerance: MXU operands are bf16 (f32 accumulation).
    y_ref = _reference(x, weight, bias, gamma, beta, STRIDE)
    err = float(jnp.max(jnp.abs(y - y_ref)))
    assert err < 0.2, f"max abs err {err}"

    print("KERNEL_OK")
</pallas_src>

<mosaic_0001>
module attributes {stable_mosaic.version = 11 : i64} {
  func.func @_fused_convblk_kernel(%arg0: i32, %arg1: i32, %arg2: memref<1x12x22xbf16, #tpu.memory_space<vmem>>, %arg3: memref<8x84xbf16, #tpu.memory_space<vmem>>, %arg4: memref<8x3xf32, #tpu.memory_space<vmem>>, %arg5: memref<1x8x15xf32, #tpu.memory_space<vmem>>, %arg6: memref<2x8x15xf32, #tpu.memory_space<vmem>>, %arg7: memref<8x1xf32, #tpu.memory_space<vmem>>, %arg8: memref<8x1xf32, #tpu.memory_space<vmem>>) attributes {dimension_semantics = [#tpu.dimension_semantics<arbitrary>, #tpu.dimension_semantics<arbitrary>], iteration_bounds = array<i64: 2, 2>, scalar_prefetch = 0 : i64, scratch_operands = 3 : i64, tpu.core_type = #tpu.core_type<tc>, window_params = [{transform_indices = @transform_0, window_bounds = array<i64: 1, 12, 22>}, {pipeline_mode = #tpu.pipeline_mode<synchronous>, transform_indices = @transform_1, window_bounds = array<i64: 8, 84>}, {pipeline_mode = #tpu.pipeline_mode<synchronous>, transform_indices = @transform_2, window_bounds = array<i64: 8, 3>}, {transform_indices = @transform_3, window_bounds = array<i64: 1, 8, 15>}]} {
    %c0_i32 = arith.constant 0 : i32
    %0 = arith.cmpi eq, %arg0, %c0_i32 : i32
    %c0_i32_0 = arith.constant 0 : i32
    %1 = arith.cmpi eq, %arg1, %c0_i32_0 : i32
    %2 = arith.andi %0, %1 : i1
    %3 = arith.extui %2 : i1 to i32
    %c0_i32_1 = arith.constant 0 : i32
    %4 = arith.cmpi ne, %3, %c0_i32_1 : i32
    scf.if %4 {
      %cst = arith.constant 0.000000e+00 : f32
      %11 = vector.broadcast %cst : f32 to vector<8x1xf32>
      %c0 = arith.constant 0 : index
      %c0_5 = arith.constant 0 : index
      %12 = vector.load %arg7[%c0, %c0_5] : memref<8x1xf32, #tpu.memory_space<vmem>>, vector<8x1xf32>
      tpu.vector_store %arg7[%c0, %c0_5], %11 {strides = array<i32>} : memref<8x1xf32, #tpu.memory_space<vmem>>, vector<8x1xf32>,
      %cst_6 = arith.constant 0.000000e+00 : f32
      %13 = vector.broadcast %cst_6 : f32 to vector<8x1xf32>
      %c0_7 = arith.constant 0 : index
      %c0_8 = arith.constant 0 : index
      %14 = vector.load %arg8[%c0_7, %c0_8] : memref<8x1xf32, #tpu.memory_space<vmem>>, vector<8x1xf32>
      tpu.vector_store %arg8[%c0_7, %c0_8], %13 {strides = array<i32>} : memref<8x1xf32, #tpu.memory_space<vmem>>, vector<8x1xf32>,
    } else {
    }
    %c0_i32_2 = arith.constant 0 : i32
    %5 = arith.cmpi eq, %arg0, %c0_i32_2 : i32
    %6 = arith.extui %5 : i1 to i32
    %c0_i32_3 = arith.constant 0 : i32
    %7 = arith.cmpi ne, %6, %c0_i32_3 : i32
    scf.if %7 {
      %c0 = arith.constant 0 : index
      %c0_5 = arith.constant 0 : index
      %c0_6 = arith.constant 0 : index
      %11 = vector.load %arg2[%c0, %c0_5, %c0_6] : memref<1x12x22xbf16, #tpu.memory_space<vmem>>, vector<1x12x22xbf16>
      %12 = vector.shape_cast %11 : vector<1x12x22xbf16> to vector<12x22xbf16>
      %c0_7 = arith.constant 0 : index
      %c0_8 = arith.constant 0 : index
      %13 = vector.load %arg3[%c0_7, %c0_8] : memref<8x84xbf16, #tpu.memory_space<vmem>>, vector<8x84xbf16>
      %c0_9 = arith.constant 0 : index
      %c0_10 = arith.constant 0 : index
      %14 = vector.load %arg4[%c0_9, %c0_10] : memref<8x3xf32, #tpu.memory_space<vmem>>, vector<8x1xf32>
      %15 = vector.extract_strided_slice %13 {offsets = [0, 0], sizes = [8, 12], strides = [1, 1]} : vector<8x84xbf16> to vector<8x12xbf16>
      %16 = vector.extract_strided_slice %12 {offsets = [0, 0], sizes = [12, 15], strides = [1, 1]} : vector<12x22xbf16> to vector<12x15xbf16>
      %cst = arith.constant dense<0.000000e+00> : vector<8x15xf32>
      %17 = tpu.matmul %15, %16, %cst {dimension_numbers = #tpu.dot_dimension_numbers<[1], [0], [0], [1], [0, 0, 1, 1], [], []>} : vector<8x12xbf16>, vector<12x15xbf16>, vector<8x15xf32> -> vector<8x15xf32>
      %18 = vector.extract_strided_slice %13 {offsets = [0, 12], sizes = [8, 12], strides = [1, 1]} : vector<8x84xbf16> to vector<8x12xbf16>
      %19 = vector.extract_strided_slice %12 {offsets = [0, 1], sizes = [12, 15], strides = [1, 1]} : vector<12x22xbf16> to vector<12x15xbf16>
      %cst_11 = arith.constant dense<0.000000e+00> : vector<8x15xf32>
      %20 = tpu.matmul %18, %19, %cst_11 {dimension_numbers = #tpu.dot_dimension_numbers<[1], [0], [0], [1], [0, 0, 1, 1], [], []>} : vector<8x12xbf16>, vector<12x15xbf16>, vector<8x15xf32> -> vector<8x15xf32>
      %21 = arith.addf %17, %20 : vector<8x15xf32>
      %22 = vector.extract_strided_slice %13 {offsets = [0, 24], sizes = [8, 12], strides = [1, 1]} : vector<8x84xbf16> to vector<8x12xbf16>
      %23 = vector.extract_strided_slice %12 {offsets = [0, 2], sizes = [12, 15], strides = [1, 1]} : vector<12x22xbf16> to vector<12x15xbf16>
      %cst_12 = arith.constant dense<0.000000e+00> : vector<8x15xf32>
      %24 = tpu.matmul %22, %23, %cst_12 {dimension_numbers = #tpu.dot_dimension_numbers<[1], [0], [0], [1], [0, 0, 1, 1], [], []>} : vector<8x12xbf16>, vector<12x15xbf16>, vector<8x15xf32> -> vector<8x15xf32>
      %25 = arith.addf %21, %24 : vector<8x15xf32>
      %26 = vector.extract_strided_slice %13 {offsets = [0, 36], sizes = [8, 12], strides = [1, 1]} : vector<8x84xbf16> to vector<8x12xbf16>
      %27 = vector.extract_strided_slice %12 {offsets = [0, 3], sizes = [12, 15], strides = [1, 1]} : vector<12x22xbf16> to vector<12x15xbf16>
      %cst_13 = arith.constant dense<0.000000e+00> : vector<8x15xf32>
      %28 = tpu.matmul %26, %27, %cst_13 {dimension_numbers = #tpu.dot_dimension_numbers<[1], [0], [0], [1], [0, 0, 1, 1], [], []>} : vector<8x12xbf16>, vector<12x15xbf16>, vector<8x15xf32> -> vector<8x15xf32>
      %29 = arith.addf %25, %28 : vector<8x15xf32>
      %30 = vector.extract_strided_slice %13 {offsets = [0, 48], sizes = [8, 12], strides = [1, 1]} : vector<8x84xbf16> to vector<8x12xbf16>
      %31 = vector.extract_strided_slice %12 {offsets = [0, 4], sizes = [12, 15], strides = [1, 1]} : vector<12x22xbf16> to vector<12x15xbf16>
      %cst_14 = arith.constant dense<0.000000e+00> : vector<8x15xf32>
      %32 = tpu.matmul %30, %31, %cst_14 {dimension_numbers = #tpu.dot_dimension_numbers<[1], [0], [0], [1], [0, 0, 1, 1], [], []>} : vector<8x12xbf16>, vector<12x15xbf16>, vector<8x15xf32> -> vector<8x15xf32>
      %33 = arith.addf %29, %32 : vector<8x15xf32>
      %34 = vector.extract_strided_slice %13 {offsets = [0, 60], sizes = [8, 12], strides = [1, 1]} : vector<8x84xbf16> to vector<8x12xbf16>
      %35 = vector.extract_strided_slice %12 {offsets = [0, 5], sizes = [12, 15], strides = [1, 1]} : vector<12x22xbf16> to vector<12x15xbf16>
      %cst_15 = arith.constant dense<0.000000e+00> : vector<8x15xf32>
      %36 = tpu.matmul %34, %35, %cst_15 {dimension_numbers = #tpu.dot_dimension_numbers<[1], [0], [0], [1], [0, 0, 1, 1], [], []>} : vector<8x12xbf16>, vector<12x15xbf16>, vector<8x15xf32> -> vector<8x15xf32>
      %37 = arith.addf %33, %36 : vector<8x15xf32>
      %38 = vector.extract_strided_slice %13 {offsets = [0, 72], sizes = [8, 12], strides = [1, 1]} : vector<8x84xbf16> to vector<8x12xbf16>
      %39 = vector.extract_strided_slice %12 {offsets = [0, 6], sizes = [12, 15], strides = [1, 1]} : vector<12x22xbf16> to vector<12x15xbf16>
      %cst_16 = arith.constant dense<0.000000e+00> : vector<8x15xf32>
      %40 = tpu.matmul %38, %39, %cst_16 {dimension_numbers = #tpu.dot_dimension_numbers<[1], [0], [0], [1], [0, 0, 1, 1], [], []>} : vector<8x12xbf16>, vector<12x15xbf16>, vector<8x15xf32> -> vector<8x15xf32>
      %41 = arith.addf %37, %40 : vector<8x15xf32>
      %42 = vector.broadcast %14 : vector<8x1xf32> to vector<8x15xf32>
      %43 = arith.addf %41, %42 : vector<8x15xf32>
      %cst_17 = arith.constant 0.000000e+00 : f32
      %44 = vector.broadcast %cst_17 : f32 to vector<8x15xf32>
      %45 = arith.maximumf %43, %44 : vector<8x15xf32>
      %46 = arith.index_cast %arg1 : i32 to index
      %c0_18 = arith.constant 0 : index
      %c0_19 = arith.constant 0 : index
      %47 = vector.load %arg6[%46, %c0_18, %c0_19] : memref<2x8x15xf32, #tpu.memory_space<vmem>>, vector<1x8x15xf32>
      %48 = vector.shape_cast %47 : vector<1x8x15xf32> to vector<8x15xf32>
      %49 = vector.shape_cast %45 : vector<8x15xf32> to vector<1x8x15xf32>
      tpu.vector_store %arg6[%46, %c0_18, %c0_19], %49 {strides = array<i32>} : memref<2x8x15xf32, #tpu.memory_space<vmem>>, vector<1x8x15xf32>,
      %c0_20 = arith.constant 0 : index
      %c0_21 = arith.constant 0 : index
      %50 = vector.load %arg7[%c0_20, %c0_21] : memref<8x1xf32, #tpu.memory_space<vmem>>, vector<8x1xf32>
      %cst_22 = arith.constant dense<0.000000e+00> : vector<8xf32>
      %51 = vector.multi_reduction <add>, %45, %cst_22 [1] : vector<8x15xf32> to vector<8xf32>
      %52 = vector.shape_cast %51 : vector<8xf32> to vector<8x1xf32>
      %53 = arith.addf %50, %52 : vector<8x1xf32>
      %c0_23 = arith.constant 0 : index
      %c0_24 = arith.constant 0 : index
      %54 = vector.load %arg7[%c0_23, %c0_24] : memref<8x1xf32, #tpu.memory_space<vmem>>, vector<8x1xf32>
      tpu.vector_store %arg7[%c0_23, %c0_24], %53 {strides = array<i32>} : memref<8x1xf32, #tpu.memory_space<vmem>>, vector<8x1xf32>,
      %c0_25 = arith.constant 0 : index
      %c0_26 = arith.constant 0 : index
      %55 = vector.load %arg8[%c0_25, %c0_26] : memref<8x1xf32, #tpu.memory_space<vmem>>, vector<8x1xf32>
      %56 = arith.mulf %45, %45 : vector<8x15xf32>
      %cst_27 = arith.constant dense<0.000000e+00> : vector<8xf32>
      %57 = vector.multi_reduction <add>, %56, %cst_27 [1] : vector<8x15xf32> to vector<8xf32>
      %58 = vector.shape_cast %57 : vector<8xf32> to vector<8x1xf32>
      %59 = arith.addf %55, %58 : vector<8x1xf32>
      %c0_28 = arith.constant 0 : index
      %c0_29 = arith.constant 0 : index
      %60 = vector.load %arg8[%c0_28, %c0_29] : memref<8x1xf32, #tpu.memory_space<vmem>>, vector<8x1xf32>
      tpu.vector_store %arg8[%c0_28, %c0_29], %59 {strides = array<i32>} : memref<8x1xf32, #tpu.memory_space<vmem>>, vector<8x1xf32>,
    } else {
    }
    %c1_i32 = arith.constant 1 : i32
    %8 = arith.cmpi eq, %arg0, %c1_i32 : i32
    %9 = arith.extui %8 : i1 to i32
    %c0_i32_4 = arith.constant 0 : i32
    %10 = arith.cmpi ne, %9, %c0_i32_4 : i32
    scf.if %10 {
      %c0 = arith.constant 0 : index
      %c1 = arith.constant 1 : index
      %11 = vector.load %arg4[%c0, %c1] : memref<8x3xf32, #tpu.memory_space<vmem>>, vector<8x1xf32>
      %c0_5 = arith.constant 0 : index
      %c2 = arith.constant 2 : index
      %12 = vector.load %arg4[%c0_5, %c2] : memref<8x3xf32, #tpu.memory_space<vmem>>, vector<8x1xf32>
      %c0_6 = arith.constant 0 : index
      %c0_7 = arith.constant 0 : index
      %13 = vector.load %arg7[%c0_6, %c0_7] : memref<8x1xf32, #tpu.memory_space<vmem>>, vector<8x1xf32>
      %cst = arith.constant 0.0333333351 : f32
      %14 = vector.broadcast %cst : f32 to vector<8x1xf32>
      %15 = arith.mulf %13, %14 : vector<8x1xf32>
      %c0_8 = arith.constant 0 : index
      %c0_9 = arith.constant 0 : index
      %16 = vector.load %arg8[%c0_8, %c0_9] : memref<8x1xf32, #tpu.memory_space<vmem>>, vector<8x1xf32>
      %cst_10 = arith.constant 0.0333333351 : f32
      %17 = vector.broadcast %cst_10 : f32 to vector<8x1xf32>
      %18 = arith.mulf %16, %17 : vector<8x1xf32>
      %19 = arith.mulf %15, %15 : vector<8x1xf32>
      %20 = arith.subf %18, %19 : vector<8x1xf32>
      %cst_11 = arith.constant 0.000000e+00 : f32
      %21 = vector.broadcast %cst_11 : f32 to vector<8x1xf32>
      %22 = arith.maximumf %20, %21 : vector<8x1xf32>
      %cst_12 = arith.constant 9.99999974E-6 : f32
      %23 = vector.broadcast %cst_12 : f32 to vector<8x1xf32>
      %24 = arith.addf %22, %23 : vector<8x1xf32>
      %25 = math.rsqrt %24 : vector<8x1xf32>
      %26 = arith.mulf %11, %25 : vector<8x1xf32>
      %27 = arith.mulf %15, %26 : vector<8x1xf32>
      %28 = arith.subf %12, %27 : vector<8x1xf32>
      %29 = arith.index_cast %arg1 : i32 to index
      %c0_13 = arith.constant 0 : index
      %c0_14 = arith.constant 0 : index
      %30 = vector.load %arg6[%29, %c0_13, %c0_14] : memref<2x8x15xf32, #tpu.memory_space<vmem>>, vector<1x8x15xf32>
      %31 = vector.shape_cast %30 : vector<1x8x15xf32> to vector<8x15xf32>
      %32 = vector.broadcast %26 : vector<8x1xf32> to vector<8x15xf32>
      %33 = arith.mulf %31, %32 : vector<8x15xf32>
      %34 = vector.broadcast %28 : vector<8x1xf32> to vector<8x15xf32>
      %35 = arith.addf %33, %34 : vector<8x15xf32>
      %c0_15 = arith.constant 0 : index
      %c0_16 = arith.constant 0 : index
      %c0_17 = arith.constant 0 : index
      %36 = vector.load %arg5[%c0_15, %c0_16, %c0_17] : memref<1x8x15xf32, #tpu.memory_space<vmem>>, vector<1x8x15xf32>
      %37 = vector.shape_cast %36 : vector<1x8x15xf32> to vector<8x15xf32>
      %38 = vector.shape_cast %35 : vector<8x15xf32> to vector<1x8x15xf32>
      tpu.vector_store %arg5[%c0_15, %c0_16, %c0_17], %38 {strides = array<i32>} : memref<1x8x15xf32, #tpu.memory_space<vmem>>, vector<1x8x15xf32>,
    } else {
    }
    return
  }
  func.func @transform_0(%arg0: i32, %arg1: i32) -> (i32, i32, i32) {
    %c1_i32 = arith.constant 1 : i32
    %0 = arith.subi %c1_i32, %arg0 : i32
    %1 = arith.muli %arg1, %0 : i32
    %c0_i32 = arith.constant 0 : i32
    %c0_i32_0 = arith.constant 0 : i32
    %c0_i32_1 = arith.constant 0 : i32
    return %1, %c0_i32, %c0_i32_0 : i32, i32, i32
  }
  func.func @transform_1(%arg0: i32, %arg1: i32) -> (i32, i32) {
    %c0_i32 = arith.constant 0 : i32
    %c0_i32_0 = arith.constant 0 : i32
    %c0_i32_1 = arith.constant 0 : i32
    return %c0_i32, %c0_i32_0 : i32, i32
  }
  func.func @transform_2(%arg0: i32, %arg1: i32) -> (i32, i32) {
    %c0_i32 = arith.constant 0 : i32
    %c0_i32_0 = arith.constant 0 : i32
    %c0_i32_1 = arith.constant 0 : i32
    return %c0_i32, %c0_i32_0 : i32, i32
  }
  func.func @transform_3(%arg0: i32, %arg1: i32) -> (i32, i32, i32) {
    %0 = arith.muli %arg1, %arg0 : i32
    %c0_i32 = arith.constant 0 : i32
    %c0_i32_0 = arith.constant 0 : i32
    %c0_i32_1 = arith.constant 0 : i32
    return %0, %c0_i32, %c0_i32_0 : i32, i32, i32
  }
}

</mosaic_0001>

<llo_original>
// kernel: tpu_custom_call.1
$region0: #{tpu_custom_call.1}
  #allocation0 [shape = 'u32[]', space=smem, size = 0x4, offset = 0x4, fixed_abs, tag = 'smem constant byte address 0x4 - core index']
  #allocation1 [shape = 'u32[144,128]{1,0:T(1,128)}', space=vmem, size = 0x12000, scoped, tag = 'internal scratch']
  #allocation2 [shape = 'f32[2,8,15]{2,1,0:T(8,128)}', space=vmem, size = 0x2000, scoped, tag = 'scratch operand']
  #allocation3 [shape = 'f32[8,1]{1,0:T(8,128)}', space=vmem, size = 0x1000, scoped, tag = 'scratch operand']
  #allocation4 [shape = 'f32[8,1]{1,0:T(8,128)}', space=vmem, size = 0x1000, scoped, tag = 'scratch operand']
  %s0 = inlined_call_operand.vmem [shape: bf16[2,12,22], index: 0, kind: input, shape index: {}]
  %s1 = inlined_call_operand.vmem [shape: bf16[8,84], index: 1, kind: input, shape index: {}]
  %s2 = inlined_call_operand.vmem [shape: f32[8,3], index: 2, kind: input, shape index: {}]
  %s3 = inlined_call_operand.hbm [shape: f32[2,8,15], index: 3, kind: output, shape index: {}]
  %s4 = sld [smem:[#allocation0]]
  $region57: #{tpu_custom_call.1} parent=0
    _
  %s6 = ssub.s32 1, %s4
  %s7 = scalar_select 0, %s6, %s4
  $region1: #{tpu_custom_call.1} parent=0
    #allocation5 [shape = 'u8[8192]{0}', space=vmem, size = 0x2000, scoped, tag = 'output window, operand 0']
    #allocation6 [shape = 's32[2]{0}', space=sflag, size = 0x8, scoped, tag = 'scoped memory for tpu_custom_call.1']
    %8 = vsyncpa [#allocation6], 0
    %s9 = scalar_lea.sflag [#allocation6], 1
    %10 = vsyncpa %s9, 0
    loop: start=0, step=1, limit=6
    $region2: #{tpu_custom_call.1} parent=1 // loop_pre_header
      _
    $region3: #{tpu_custom_call.1} parent=1 // loop_header
      %s12 = sphi 0, %s16
      %p13 = scmp.ge.s32.totalorder %s12, 6
      %s19 = sphi 0, %s31
      %s20 = sphi 0, %s27
      %s21 = sphi 0, %s19
      %s22 = sphi 0, %s20
      %s23 = sphi 0, %s21
      %s24 = sphi 0, %s22
      %s38 = sphi 0, %s40
      %s41 = sphi 0, %s38
      %s42 = sphi 0, %s41
      %s58 = sphi 0, %s42
      %s62 = sphi 0, %s62
      %s64 = sphi 0, %s62
      %s65 = sphi 0, %s64
      %s79 = sphi 0, %s65
      %s83 = sphi 0, %s83
      %s85 = sphi 0, %s83
      %s86 = sphi 0, %s85
      %s100 = sphi 0, %s86
      %s108 = sphi 0, %s110
      %s111 = sphi 0, %s108
      %s112 = sphi 0, %s111
      %s128 = sphi 0, %s112
    $region4: #{tpu_custom_call.1} parent=1 // loop_header_branch
      %15 = sbr.rel (%p13) target = $region8
    $region5: #{tpu_custom_call.1} parent=1 // loop_body
      %s17 = ssub.s32 %s12, 1
      %s18 = ssub.s32 %s12, 2
      %s25 = sadd.s32 1, %s20
      %p26 = scmp.ge.s32.totalorder %s25, 2
      %s27 = scalar_select %p26, 0, %s25
      %s28 = sadd.s32 1, %s19
      %s29 = scalar_select %p26, %s28, %s19
      %p30 = scmp.ge.s32.totalorder %s29, 2
      %s31 = scalar_select %p30, 0, %s29
      %s32 = ssub.s32 1, %s19
      %s33 = smul.u32 %s20, %s32
      %s34 = ssub.s32 1, %s31
      %s35 = smul.u32 %s27, %s34
      %s36 = ssub.s32 %s33, %s35
      %p37 = scmp.eq.s32.totalorder %s36, 0
      %s39 = sadd.s32 %s38, 1
      %s40 = scalar_select %p37, %s38, %s39
      %p43 = pneg %p37
      %p44 = scmp.eq.s32.totalorder %s12, 3
      %p45 = por %p43, %p44
      %p46 = scmp.ne.s32.totalorder %s38, %s41
      %p47 = scmp.eq.s32.totalorder %s12, 0
      %p48 = por %p46, %p47
      %p49 = scmp.ne.s32.totalorder %s38, %s41
      %p50 = scmp.eq.s32.totalorder %s17, 3
      %p51 = por %p49, %p50
      %p52 = scmp.ne.s32.totalorder %s41, %s42
      %p53 = scmp.eq.s32.totalorder %s17, 0
      %p54 = por %p52, %p53
      %p55 = scmp.ne.s32.totalorder %s41, %s42
      %p56 = scmp.eq.s32.totalorder %s18, 3
      %p57 = por %p55, %p56
      %p59 = scmp.ne.s32.totalorder %s42, %s58
      %p60 = scmp.eq.s32.totalorder %s18, 0
      %p61 = por %p59, %p60
      %s63 = sadd.s32 %s62, 1
      %p66 = scmp.eq.s32.totalorder %s12, 3
      %p67 = scmp.ne.s32.totalorder %s62, %s64
      %p68 = scmp.eq.s32.totalorder %s12, 0
      %p69 = por %p67, %p68
      %p70 = scmp.ne.s32.totalorder %s62, %s64
      %p71 = scmp.eq.s32.totalorder %s17, 3
      %p72 = por %p70, %p71
      %p73 = scmp.ne.s32.totalorder %s64, %s65
      %p74 = scmp.eq.s32.totalorder %s17, 0
      %p75 = por %p73, %p74
      %p76 = scmp.ne.s32.totalorder %s64, %s65
      %p77 = scmp.eq.s32.totalorder %s18, 3
      %p78 = por %p76, %p77
      %p80 = scmp.ne.s32.totalorder %s65, %s79
      %p81 = scmp.eq.s32.totalorder %s18, 0
      %p82 = por %p80, %p81
      %s84 = sadd.s32 %s83, 1
      %p87 = scmp.eq.s32.totalorder %s12, 3
      %p88 = scmp.ne.s32.totalorder %s83, %s85
      %p89 = scmp.eq.s32.totalorder %s12, 0
      %p90 = por %p88, %p89
      %p91 = scmp.ne.s32.totalorder %s83, %s85
      %p92 = scmp.eq.s32.totalorder %s17, 3
      %p93 = por %p91, %p92
      %p94 = scmp.ne.s32.totalorder %s85, %s86
      %p95 = scmp.eq.s32.totalorder %s17, 0
      %p96 = por %p94, %p95
      %p97 = scmp.ne.s32.totalorder %s85, %s86
      %p98 = scmp.eq.s32.totalorder %s18, 3
      %p99 = por %p97, %p98
      %p101 = scmp.ne.s32.totalorder %s86, %s100
      %p102 = scmp.eq.s32.totalorder %s18, 0
      %p103 = por %p101, %p102
      %s104 = smul.u32 %s20, %s19
      %s105 = smul.u32 %s27, %s31
      %s106 = ssub.s32 %s104, %s105
      %p107 = scmp.eq.s32.totalorder %s106, 0
      %s109 = sadd.s32 %s108, 1
      %s110 = scalar_select %p107, %s108, %s109
      %p113 = pneg %p107
      %p114 = scmp.eq.s32.totalorder %s12, 3
      %p115 = por %p113, %p114
      %p116 = scmp.ne.s32.totalorder %s108, %s111
      %p117 = scmp.eq.s32.totalorder %s12, 0
      %p118 = por %p116, %p117
      %p119 = scmp.ne.s32.totalorder %s108, %s111
      %p120 = scmp.eq.s32.totalorder %s17, 3
      %p121 = por %p119, %p120
      %p122 = scmp.ne.s32.totalorder %s111, %s112
      %p123 = scmp.eq.s32.totalorder %s17, 0
      %p124 = por %p122, %p123
      %p125 = scmp.ne.s32.totalorder %s111, %s112
      %p126 = scmp.eq.s32.totalorder %s18, 3
      %p127 = por %p125, %p126
      %p129 = scmp.ne.s32.totalorder %s112, %s128
      %p130 = scmp.eq.s32.totalorder %s18, 0
      %p131 = por %p129, %p130
      %p132 = scmp.le.s32.totalorder 1, %s12
      %p133 = scmp.lt.s32.totalorder %s12, 5
      %p134 = pnand %p132, %p133
      %p135 = pneg %p134
      // Predicated region
      $region9: #{tpu_custom_call.1} parent=5 // pred_check
        _
      $region10: #{tpu_custom_call.1} parent=5 // pred_check_branch
        %137 = sbr.rel (%p134) target = $region12
      $region11: #{tpu_custom_call.1} parent=5 // pred_region
        %s138 = ssub.s32 %s12, 1
        // Predicated region
        $region13: #{tpu_custom_call.1} parent=11 // pred_check
          %p139 = pneg %p75
        $region14: #{tpu_custom_call.1} parent=11 // pred_check_branch
          %141 = sbr.rel (%p139) target = $region16
        $region15: #{tpu_custom_call.1} parent=11 // pred_region
          _
        $region16: #{tpu_custom_call.1} parent=11 // pred_fallthru
          _
        // Predicated region
        $region17: #{tpu_custom_call.1} parent=11 // pred_check
          %p142 = pneg %p96
        $region18: #{tpu_custom_call.1} parent=11 // pred_check_branch
          %144 = sbr.rel (%p142) target = $region20
        $region19: #{tpu_custom_call.1} parent=11 // pred_region
          _
        $region20: #{tpu_custom_call.1} parent=11 // pred_fallthru
          _
      $region12: #{tpu_custom_call.1} parent=5 // pred_fallthru
        _
      %p145 = scmp.lt.s32.totalorder %s12, 4
      // Predicated region
      $region21: #{tpu_custom_call.1} parent=5 // pred_check
        %p146 = pneg %p145
      $region22: #{tpu_custom_call.1} parent=5 // pred_check_branch
        %148 = sbr.rel (%p146) target = $region24
      $region23: #{tpu_custom_call.1} parent=5 // pred_region
        // Predicated region
        $region25: #{tpu_custom_call.1} parent=23 // pred_check
          %p149 = pneg %p48
        $region26: #{tpu_custom_call.1} parent=23 // pred_check_branch
          %151 = sbr.rel (%p149) target = $region28
        $region27: #{tpu_custom_call.1} parent=23 // pred_region
          %s152 = ssub.s32 1, %s19
          %s153 = smul.u32 %s20, %s152
          %p154 = scmp.lt.s32.totalorder %s153, 1
          %s155 = scalar_select %p154, %s153, 1
          %s156 = smul.addr %s155, 2
          %s157 = smul.addr %s156, 4
          %s158 = scalar_lea.vmem %s0, %s157
          %s159 = ssub.s32 1, %s19
          %s160 = smul.u32 %s20, %s159
        $region28: #{tpu_custom_call.1} parent=23 // pred_fallthru
          _
      $region24: #{tpu_custom_call.1} parent=5 // pred_fallthru
        _
      %p161 = scmp.le.s32.totalorder 1, %s12
      %p162 = scmp.lt.s32.totalorder %s12, 5
      %p163 = pnand %p161, %p162
      %p164 = pneg %p163
      // Predicated region
      $region29: #{tpu_custom_call.1} parent=5 // pred_check
        _
      $region30: #{tpu_custom_call.1} parent=5 // pred_check_branch
        %166 = sbr.rel (%p163) target = $region32
      $region31: #{tpu_custom_call.1} parent=5 // pred_region
        %s167 = ssub.s32 %s12, 1
        %s168 = ssub.s32 1, %s21
        %s169 = smul.u32 %s22, %s168
        %p170 = scmp.lt.s32.totalorder %s169, 1
        %s171 = scalar_select %p170, %s169, 1
        %s172 = smul.addr %s171, 2
        %s173 = smul.addr %s172, 4
        %s174 = scalar_lea.vmem %s0, %s173
        %p175 = pneg %p54
        %p176 = pneg %p51
        %p177 = pneg %p75
        %p178 = pneg %p72
        %p179 = pneg %p96
        %p180 = pneg %p93
        %p181 = pneg %p124
        %p182 = pneg %p121
        %s183 = sand.u32 %s111, 1
        %s184 = scalar_lea.sflag [#allocation6], %s183
        %s185 = sand.u32 %s111, 1
        %s186 = smul.addr %s185, 8
        %s187 = scalar_lea.vmem [#allocation5], %s186
        %s188 = ssub.s32 1, %s21
        %s189 = smul.u32 %s22, %s188
        %p190 = scmp.lt.s32.totalorder %s189, 1
        %s191 = scalar_select %p190, %s189, 1
        %s192 = smul.addr %s191, 2
        %s193 = smul.addr %s192, 4
        %s194 = scalar_lea.vmem %s0, %s193
        %s195 = ssub.s32 1, %s21
        %s196 = smul.u32 %s22, %s195
        %s197 = smul.u32 %s22, %s21
        %p199 = scmp.eq.s32.totalorder %s21, 0
        %p200 = scmp.eq.s32.totalorder %s22, 0
        %p201 = pnand %p199, %p200
        %p202 = pneg %p201
        // Predicated region
        $region33: #{tpu_custom_call.1} parent=31 // pred_check
          _
        $region34: #{tpu_custom_call.1} parent=31 // pred_check_branch
          %204 = sbr.rel (%p201) target = $region36
        $region35: #{tpu_custom_call.1} parent=31 // pred_region
          %vm205 = vcmask 7168
          %206 = vst.msk [vmem:[#allocation3] sm:$0xff] %vm205, 0.0
          %207 = vst.msk [vmem:[#allocation4] sm:$0xff] %vm205, 0.0
        $region36: #{tpu_custom_call.1} parent=31 // pred_fallthru
          _
        // Predicated region
        $region37: #{tpu_custom_call.1} parent=31 // pred_check
          %p208 = pneg %p199
        $region38: #{tpu_custom_call.1} parent=31 // pred_check_branch
          %210 = sbr.rel (%p208) target = $region40
        $region39: #{tpu_custom_call.1} parent=31 // pred_region
          %v211 = vld [vmem:[%s194] sm:$0xf]
          %v212 = vld [vmem:[%s194 + $0x4] sm:$0x3]
          %v213 = vld [vmem:[%s1] sm:$0xf]
          %v214 = vld [vmem:[%s2] sm:$0xff]
          %v216 = vunpack.c.l.b16 %v213
          %v217 = vpack.c.b16 %v216, %v216
          %218 = vrot.lane.b32.xlu0 %v217, 116
          %v219 = vpop.permute.xlu0 %218
          %v222 = vunpack.c.l.b16 %v211
          %v223 = vunpack.c.l.b16 %v212
          %v224 = vpack.c.b16 %v223, %v222
          %225 = vrot.lane.b32.xlu0 %v224, 127
          %v226 = vpop.permute.xlu0 %225
          %vm227 = vcmask 97280
          %v229 = vsel %vm227, %v219, 0
          %vm231 = vcmask 1045504
          %v233 = vsel %vm231, %v226, 0
          %235 = vmatprep.subr.bf16.mxu0 0
          %236 = vmatpush1.bf16.msra.mxu0 %v233
          %237 = vmatprep.subr.bf16.mxu0 0
          %238 = vmatpush1.bf16.msra.mxu0 0
          %239 = vmatprep.subr.bf16.mxu0 0
          %240 = vmatpush1.bf16.msra.mxu0 0
          %241 = vmatprep.subr.bf16.mxu0 0
          %242 = vmatpush1.bf16.msra.mxu0 0
          %243 = vmatprep.subr.bf16.mxu0 0
          %244 = vmatpush1.bf16.msra.mxu0 0
          %245 = vmatprep.subr.bf16.mxu0 0
          %246 = vmatpush1.bf16.msra.mxu0 0
          %247 = vmatprep.subr.bf16.mxu0 0
          %248 = vmatpush1.bf16.msra.mxu0 0
          %249 = vmatprep.subr.bf16.mxu0 0
          %250 = vmatpush1.bf16.msra.mxu0 0
          %251 = vmatprep.subr.bf16.mxu0 0
          %252 = vmatpush1.bf16.msra.mxu0 0
          %253 = vmatprep.subr.bf16.mxu0 0
          %254 = vmatpush1.bf16.msra.mxu0 0
          %255 = vmatprep.subr.bf16.mxu0 0
          %256 = vmatpush1.bf16.msra.mxu0 0
          %257 = vmatprep.subr.bf16.mxu0 0
          %258 = vmatpush1.bf16.msra.mxu0 0
          %259 = vmatprep.subr.bf16.mxu0 0
          %260 = vmatpush1.bf16.msra.mxu0 0
          %261 = vmatprep.subr.bf16.mxu0 0
          %262 = vmatpush1.bf16.msra.mxu0 0
          %263 = vmatprep.subr.bf16.mxu0 0
          %264 = vmatpush1.bf16.msra.mxu0 0
          %265 = vmatprep.subr.bf16.mxu0 0
          %266 = vmatpush1.bf16.msra.mxu0 0
          %267 = vmatprep.mubr.bf16.mxu0 0
          %268 = vmatmul.mubr.bf16.gmra.mrb[0].mxu0 %v229
          %v269 = vpop.f32.mrb[0].mxu0
          %v270 = vadd.f32 0.0, %v269
          %v271 = vpop.f32.mrb[0].mxu0
          %v272 = vpop.f32.mrb[0].mxu0
          %v273 = vpop.f32.mrb[0].mxu0
          %274 = vdwg.mxu0
          %v276 = vsel %vm227, %v213, 0
          %v279 = vsel %vm231, %v224, 0
          %281 = vmatprep.subr.bf16.mxu0 0
          %282 = vmatpush1.bf16.msra.mxu0 %v279
          %283 = vmatprep.subr.bf16.mxu0 0
          %284 = vmatpush1.bf16.msra.mxu0 0
          %285 = vmatprep.subr.bf16.mxu0 0
          %286 = vmatpush1.bf16.msra.mxu0 0
          %287 = vmatprep.subr.bf16.mxu0 0
          %288 = vmatpush1.bf16.msra.mxu0 0
          %289 = vmatprep.subr.bf16.mxu0 0
          %290 = vmatpush1.bf16.msra.mxu0 0
          %291 = vmatprep.subr.bf16.mxu0 0
          %292 = vmatpush1.bf16.msra.mxu0 0
          %293 = vmatprep.subr.bf16.mxu0 0
          %294 = vmatpush1.bf16.msra.mxu0 0
          %295 = vmatprep.subr.bf16.mxu0 0
          %296 = vmatpush1.bf16.msra.mxu0 0
          %297 = vmatprep.subr.bf16.mxu0 0
          %298 = vmatpush1.bf16.msra.mxu0 0
          %299 = vmatprep.subr.bf16.mxu0 0
          %300 = vmatpush1.bf16.msra.mxu0 0
          %301 = vmatprep.subr.bf16.mxu0 0
          %302 = vmatpush1.bf16.msra.mxu0 0
          %303 = vmatprep.subr.bf16.mxu0 0
          %304 = vmatpush1.bf16.msra.mxu0 0
          %305 = vmatprep.subr.bf16.mxu0 0
          %306 = vmatpush1.bf16.msra.mxu0 0
          %307 = vmatprep.subr.bf16.mxu0 0
          %308 = vmatpush1.bf16.msra.mxu0 0
          %309 = vmatprep.subr.bf16.mxu0 0
          %310 = vmatpush1.bf16.msra.mxu0 0
          %311 = vmatprep.subr.bf16.mxu0 0
          %312 = vmatpush1.bf16.msra.mxu0 0
          %313 = vmatprep.mubr.bf16.mxu0 0
          %314 = vmatmul.mubr.bf16.gmra.mrb[0].mxu0 %v276
          %v315 = vpop.f32.mrb[0].mxu0
          %v316 = vadd.f32 %v270, %v315
          %v317 = vpop.f32.mrb[0].mxu0
          %v318 = vpop.f32.mrb[0].mxu0
          %v319 = vpop.f32.mrb[0].mxu0
          %320 = vdwg.mxu0
          %321 = vrot.lane.b32.xlu0 %v217, 104
          %v322 = vpop.permute.xlu0 %321
          %323 = vrot.lane.b32.xlu0 %v224, 126
          %v324 = vpop.permute.xlu0 %323
          %v326 = vsel %vm227, %v322, 0
          %v329 = vsel %vm231, %v324, 0
          %331 = vmatprep.subr.bf16.mxu0 0
          %332 = vmatpush1.bf16.msra.mxu0 %v329
          %333 = vmatprep.subr.bf16.mxu0 0
          %334 = vmatpush1.bf16.msra.mxu0 0
          %335 = vmatprep.subr.bf16.mxu0 0
          %336 = vmatpush1.bf16.msra.mxu0 0
          %337 = vmatprep.subr.bf16.mxu0 0
          %338 = vmatpush1.bf16.msra.mxu0 0
          %339 = vmatprep.subr.bf16.mxu0 0
          %340 = vmatpush1.bf16.msra.mxu0 0
          %341 = vmatprep.subr.bf16.mxu0 0
          %342 = vmatpush1.bf16.msra.mxu0 0
          %343 = vmatprep.subr.bf16.mxu0 0
          %344 = vmatpush1.bf16.msra.mxu0 0
          %345 = vmatprep.subr.bf16.mxu0 0
          %346 = vmatpush1.bf16.msra.mxu0 0
          %347 = vmatprep.subr.bf16.mxu0 0
          %348 = vmatpush1.bf16.msra.mxu0 0
          %349 = vmatprep.subr.bf16.mxu0 0
          %350 = vmatpush1.bf16.msra.mxu0 0
          %351 = vmatprep.subr.bf16.mxu0 0
          %352 = vmatpush1.bf16.msra.mxu0 0
          %353 = vmatprep.subr.bf16.mxu0 0
          %354 = vmatpush1.bf16.msra.mxu0 0
          %355 = vmatprep.subr.bf16.mxu0 0
          %356 = vmatpush1.bf16.msra.mxu0 0
          %357 = vmatprep.subr.bf16.mxu0 0
          %358 = vmatpush1.bf16.msra.mxu0 0
          %359 = vmatprep.subr.bf16.mxu0 0
          %360 = vmatpush1.bf16.msra.mxu0 0
          %361 = vmatprep.subr.bf16.mxu0 0
          %362 = vmatpush1.bf16.msra.mxu0 0
          %363 = vmatprep.mubr.bf16.mxu0 0
          %364 = vmatmul.mubr.bf16.gmra.mrb[0].mxu0 %v326
          %v365 = vpop.f32.mrb[0].mxu0
          %v366 = vadd.f32 0.0, %v365
          %v367 = vpop.f32.mrb[0].mxu0
          %v368 = vpop.f32.mrb[0].mxu0
          %v369 = vpop.f32.mrb[0].mxu0
          %370 = vdwg.mxu0
          %v371 = vadd.f32 %v316, %v366
          %372 = vrot.lane.b32.xlu0 %v217, 92
          %v373 = vpop.permute.xlu0 %372
          %374 = vrot.lane.b32.xlu0 %v224, 125
          %v375 = vpop.permute.xlu0 %374
          %v377 = vsel %vm227, %v373, 0
          %v380 = vsel %vm231, %v375, 0
          %382 = vmatprep.subr.bf16.mxu0 0
          %383 = vmatpush1.bf16.msra.mxu0 %v380
          %384 = vmatprep.subr.bf16.mxu0 0
          %385 = vmatpush1.bf16.msra.mxu0 0
          %386 = vmatprep.subr.bf16.mxu0 0
          %387 = vmatpush1.bf16.msra.mxu0 0
          %388 = vmatprep.subr.bf16.mxu0 0
          %389 = vmatpush1.bf16.msra.mxu0 0
          %390 = vmatprep.subr.bf16.mxu0 0
          %391 = vmatpush1.bf16.msra.mxu0 0
          %392 = vmatprep.subr.bf16.mxu0 0
          %393 = vmatpush1.bf16.msra.mxu0 0
          %394 = vmatprep.subr.bf16.mxu0 0
          %395 = vmatpush1.bf16.msra.mxu0 0
          %396 = vmatprep.subr.bf16.mxu0 0
          %397 = vmatpush1.bf16.msra.mxu0 0
          %398 = vmatprep.subr.bf16.mxu0 0
          %399 = vmatpush1.bf16.msra.mxu0 0
          %400 = vmatprep.subr.bf16.mxu0 0
          %401 = vmatpush1.bf16.msra.mxu0 0
          %402 = vmatprep.subr.bf16.mxu0 0
          %403 = vmatpush1.bf16.msra.mxu0 0
          %404 = vmatprep.subr.bf16.mxu0 0
          %405 = vmatpush1.bf16.msra.mxu0 0
          %406 = vmatprep.subr.bf16.mxu0 0
          %407 = vmatpush1.bf16.msra.mxu0 0
          %408 = vmatprep.subr.bf16.mxu0 0
          %409 = vmatpush1.bf16.msra.mxu0 0
          %410 = vmatprep.subr.bf16.mxu0 0
          %411 = vmatpush1.bf16.msra.mxu0 0
          %412 = vmatprep.subr.bf16.mxu0 0
          %413 = vmatpush1.bf16.msra.mxu0 0
          %414 = vmatprep.mubr.bf16.mxu0 0
          %415 = vmatmul.mubr.bf16.gmra.mrb[0].mxu0 %v377
          %v416 = vpop.f32.mrb[0].mxu0
          %v417 = vadd.f32 0.0, %v416
          %v418 = vpop.f32.mrb[0].mxu0
          %v419 = vpop.f32.mrb[0].mxu0
          %v420 = vpop.f32.mrb[0].mxu0
          %421 = vdwg.mxu0
          %v422 = vadd.f32 %v371, %v417
          %423 = vrot.lane.b32.xlu0 %v217, 80
          %v424 = vpop.permute.xlu0 %423
          %425 = vrot.lane.b32.xlu0 %v224, 124
          %v426 = vpop.permute.xlu0 %425
          %v428 = vsel %vm227, %v424, 0
          %v431 = vsel %vm231, %v426, 0
          %433 = vmatprep.subr.bf16.mxu0 0
          %434 = vmatpush1.bf16.msra.mxu0 %v431
          %435 = vmatprep.subr.bf16.mxu0 0
          %436 = vmatpush1.bf16.msra.mxu0 0
          %437 = vmatprep.subr.bf16.mxu0 0
          %438 = vmatpush1.bf16.msra.mxu0 0
          %439 = vmatprep.subr.bf16.mxu0 0
          %440 = vmatpush1.bf16.msra.mxu0 0
          %441 = vmatprep.subr.bf16.mxu0 0
          %442 = vmatpush1.bf16.msra.mxu0 0
          %443 = vmatprep.subr.bf16.mxu0 0
          %444 = vmatpush1.bf16.msra.mxu0 0
          %445 = vmatprep.subr.bf16.mxu0 0
          %446 = vmatpush1.bf16.msra.mxu0 0
          %447 = vmatprep.subr.bf16.mxu0 0
          %448 = vmatpush1.bf16.msra.mxu0 0
          %449 = vmatprep.subr.bf16.mxu0 0
          %450 = vmatpush1.bf16.msra.mxu0 0
          %451 = vmatprep.subr.bf16.mxu0 0
          %452 = vmatpush1.bf16.msra.mxu0 0
          %453 = vmatprep.subr.bf16.mxu0 0
          %454 = vmatpush1.bf16.msra.mxu0 0
          %455 = vmatprep.subr.bf16.mxu0 0
          %456 = vmatpush1.bf16.msra.mxu0 0
          %457 = vmatprep.subr.bf16.mxu0 0
          %458 = vmatpush1.bf16.msra.mxu0 0
          %459 = vmatprep.subr.bf16.mxu0 0
          %460 = vmatpush1.bf16.msra.mxu0 0
          %461 = vmatprep.subr.bf16.mxu0 0
          %462 = vmatpush1.bf16.msra.mxu0 0
          %463 = vmatprep.subr.bf16.mxu0 0
          %464 = vmatpush1.bf16.msra.mxu0 0
          %465 = vmatprep.mubr.bf16.mxu0 0
          %466 = vmatmul.mubr.bf16.gmra.mrb[0].mxu0 %v428
          %v467 = vpop.f32.mrb[0].mxu0
          %v468 = vadd.f32 0.0, %v467
          %v469 = vpop.f32.mrb[0].mxu0
          %v470 = vpop.f32.mrb[0].mxu0
          %v471 = vpop.f32.mrb[0].mxu0
          %472 = vdwg.mxu0
          %v473 = vadd.f32 %v422, %v468
          %474 = vrot.lane.b32.xlu0 %v217, 68
          %v475 = vpop.permute.xlu0 %474
          %476 = vrot.lane.b32.xlu0 %v224, 123
          %v477 = vpop.permute.xlu0 %476
          %v479 = vsel %vm227, %v475, 0
          %v482 = vsel %vm231, %v477, 0
          %484 = vmatprep.subr.bf16.mxu0 0
          %485 = vmatpush1.bf16.msra.mxu0 %v482
          %486 = vmatprep.subr.bf16.mxu0 0
          %487 = vmatpush1.bf16.msra.mxu0 0
          %488 = vmatprep.subr.bf16.mxu0 0
          %489 = vmatpush1.bf16.msra.mxu0 0
          %490 = vmatprep.subr.bf16.mxu0 0
          %491 = vmatpush1.bf16.msra.mxu0 0
          %492 = vmatprep.subr.bf16.mxu0 0
          %493 = vmatpush1.bf16.msra.mxu0 0
          %494 = vmatprep.subr.bf16.mxu0 0
          %495 = vmatpush1.bf16.msra.mxu0 0
          %496 = vmatprep.subr.bf16.mxu0 0
          %497 = vmatpush1.bf16.msra.mxu0 0
          %498 = vmatprep.subr.bf16.mxu0 0
          %499 = vmatpush1.bf16.msra.mxu0 0
          %500 = vmatprep.subr.bf16.mxu0 0
          %501 = vmatpush1.bf16.msra.mxu0 0
          %502 = vmatprep.subr.bf16.mxu0 0
          %503 = vmatpush1.bf16.msra.mxu0 0
          %504 = vmatprep.subr.bf16.mxu0 0
          %505 = vmatpush1.bf16.msra.mxu0 0
          %506 = vmatprep.subr.bf16.mxu0 0
          %507 = vmatpush1.bf16.msra.mxu0 0
          %508 = vmatprep.subr.bf16.mxu0 0
          %509 = vmatpush1.bf16.msra.mxu0 0
          %510 = vmatprep.subr.bf16.mxu0 0
          %511 = vmatpush1.bf16.msra.mxu0 0
          %512 = vmatprep.subr.bf16.mxu0 0
          %513 = vmatpush1.bf16.msra.mxu0 0
          %514 = vmatprep.subr.bf16.mxu0 0
          %515 = vmatpush1.bf16.msra.mxu0 0
          %516 = vmatprep.mubr.bf16.mxu0 0
          %517 = vmatmul.mubr.bf16.gmra.mrb[0].mxu0 %v479
          %v518 = vpop.f32.mrb[0].mxu0
          %v519 = vadd.f32 0.0, %v518
          %v520 = vpop.f32.mrb[0].mxu0
          %v521 = vpop.f32.mrb[0].mxu0
          %v522 = vpop.f32.mrb[0].mxu0
          %523 = vdwg.mxu0
          %v524 = vadd.f32 %v473, %v519
          %525 = vrot.lane.b32.xlu0 %v217, 56
          %v526 = vpop.permute.xlu0 %525
          %527 = vrot.lane.b32.xlu0 %v224, 122
          %v528 = vpop.permute.xlu0 %527
          %v530 = vsel %vm227, %v526, 0
          %v533 = vsel %vm231, %v528, 0
          %535 = vmatprep.subr.bf16.mxu0 0
          %536 = vmatpush1.bf16.msra.mxu0 %v533
          %537 = vmatprep.subr.bf16.mxu0 0
          %538 = vmatpush1.bf16.msra.mxu0 0
          %539 = vmatprep.subr.bf16.mxu0 0
          %540 = vmatpush1.bf16.msra.mxu0 0
          %541 = vmatprep.subr.bf16.mxu0 0
          %542 = vmatpush1.bf16.msra.mxu0 0
          %543 = vmatprep.subr.bf16.mxu0 0
          %544 = vmatpush1.bf16.msra.mxu0 0
          %545 = vmatprep.subr.bf16.mxu0 0
          %546 = vmatpush1.bf16.msra.mxu0 0
          %547 = vmatprep.subr.bf16.mxu0 0
          %548 = vmatpush1.bf16.msra.mxu0 0
          %549 = vmatprep.subr.bf16.mxu0 0
          %550 = vmatpush1.bf16.msra.mxu0 0
          %551 = vmatprep.subr.bf16.mxu0 0
          %552 = vmatpush1.bf16.msra.mxu0 0
          %553 = vmatprep.subr.bf16.mxu0 0
          %554 = vmatpush1.bf16.msra.mxu0 0
          %555 = vmatprep.subr.bf16.mxu0 0
          %556 = vmatpush1.bf16.msra.mxu0 0
          %557 = vmatprep.subr.bf16.mxu0 0
          %558 = vmatpush1.bf16.msra.mxu0 0
          %559 = vmatprep.subr.bf16.mxu0 0
          %560 = vmatpush1.bf16.msra.mxu0 0
          %561 = vmatprep.subr.bf16.mxu0 0
          %562 = vmatpush1.bf16.msra.mxu0 0
          %563 = vmatprep.subr.bf16.mxu0 0
          %564 = vmatpush1.bf16.msra.mxu0 0
          %565 = vmatprep.subr.bf16.mxu0 0
          %566 = vmatpush1.bf16.msra.mxu0 0
          %567 = vmatprep.mubr.bf16.mxu0 0
          %568 = vmatmul.mubr.bf16.gmra.mrb[0].mxu0 %v530
          %v569 = vpop.f32.mrb[0].mxu0
          %v570 = vadd.f32 0.0, %v569
          %v571 = vpop.f32.mrb[0].mxu0
          %v572 = vpop.f32.mrb[0].mxu0
          %v573 = vpop.f32.mrb[0].mxu0
          %574 = vdwg.mxu0
          %v575 = vadd.f32 %v524, %v570
          %577 = vset.pattern.permute.xlu0 0
          %578 = vperm.xlu0 %577, %v214
          %v579 = vpop.permute.xlu0 %578
          %v581 = vadd.f32 %v575, %v579
          %v582 = vmax.f32 %v581, 0.0
          %s583 = smul.u32 %s22, 8
          %s584 = scalar_lea.vmem [#allocation2], %s583
          %vm585 = vcmask 121856
          %586 = vst.msk [vmem:[%s584] sm:$0xff] %vm585, %v582
          %v587 = vld [vmem:[#allocation3] sm:$0xff]
          %v588 = vsel %vm585, %v582, 0.0
          %589 = vadd.xlane.f32.xlu0 %v588
          %v590 = vpop.xlane.xlu0 %589
          %v591 = vadd.f32 %v587, %v590
          %vm592 = vcmask 7168
          %593 = vst.msk [vmem:[#allocation3] sm:$0xff] %vm592, %v591
          %v594 = vld [vmem:[#allocation4] sm:$0xff]
          %v595 = vmul.f32 %v582, %v582
          %v596 = vsel %vm585, %v595, 0.0
          %597 = vadd.xlane.f32.xlu0 %v596
          %v598 = vpop.xlane.xlu0 %597
          %v599 = vadd.f32 %v594, %v598
          %600 = vst.msk [vmem:[#allocation4] sm:$0xff] %vm592, %v599
        $region40: #{tpu_custom_call.1} parent=31 // pred_fallthru
          _
        %p601 = scmp.eq.s32.totalorder %s21, 1
        // Predicated region
        $region41: #{tpu_custom_call.1} parent=31 // pred_check
          %p602 = pneg %p601
        $region42: #{tpu_custom_call.1} parent=31 // pred_check_branch
          %604 = sbr.rel (%p602) target = $region44
        $region43: #{tpu_custom_call.1} parent=31 // pred_region
          %v605 = vld [vmem:[%s2] sm:$0xff]
          %v606 = vld [vmem:[#allocation3] sm:$0xff]
          %v607 = vmul.f32 %v606, 0.033333335
          %v608 = vld [vmem:[#allocation4] sm:$0xff]
          %v609 = vmul.f32 %v608, 0.033333335
          %v610 = vmul.f32 %v607, %v607
          %v611 = vsub.f32 %v609, %v610
          %v612 = vmax.f32 %v611, 0.0
          %v613 = vadd.f32 %v612, 1e-05
          %v614 = vrsqrt.pop %v613
          %616 = vrot.lane.b32.xlu0 %v614, 1
          %v617 = vpop.permute.xlu0 %616
          %v619 = vmul.f32 %v605, %v617
          %621 = vrot.lane.b32.xlu0 %v619, 127
          %v622 = vpop.permute.xlu0 %621
          %v624 = vmul.f32 %v607, %v622
          %626 = vrot.lane.b32.xlu0 %v624, 2
          %v627 = vpop.permute.xlu0 %626
          %v629 = vsub.f32 %v605, %v627
          %s630 = smul.u32 %s22, 8
          %s631 = scalar_lea.vmem [#allocation2], %s630
          %v632 = vld [vmem:[%s631] sm:$0xff]
          %633 = vset.pattern.permute.xlu0 1
          %634 = vperm.xlu0 %633, %v619
          %v635 = vpop.permute.xlu0 %634
          %v637 = vmul.f32 %v632, %v635
          %639 = vset.pattern.permute.xlu0 2
          %640 = vperm.xlu0 %639, %v629
          %v641 = vpop.permute.xlu0 %640
          %v643 = vadd.f32 %v637, %v641
          %vm644 = vcmask 121856
          %645 = vst.msk [vmem:[%s187] sm:$0xff] %vm644, %v643
        $region44: #{tpu_custom_call.1} parent=31 // pred_fallthru
          _
        %s646 = sand.u32 %s111, 1
        %s647 = scalar_lea.sflag [#allocation6], %s646
        %s648 = sand.u32 %s111, 1
        %s649 = smul.addr %s648, 8
        %s650 = scalar_lea.vmem [#allocation5], %s649
        // Predicated region
        $region45: #{tpu_custom_call.1} parent=31 // pred_check
          %p651 = pneg %p121
        $region46: #{tpu_custom_call.1} parent=31 // pred_check_branch
          %653 = sbr.rel (%p651) target = $region48
        $region47: #{tpu_custom_call.1} parent=31 // pred_region
          %s654 = smul.u32 %s22, %s21
          %s656 = ssub.s32 128, 128
          %657 = vsyncadd %s647, %s656
          %s658 = smul.addr %s654, 128
          %s659 = scalar_lea.hbm %s3, %s658
          %s661 = sshll.u32 %s650, 4
          %s662 = int_to_ptr.vmem [resolvable:$true] %s661
          %664 = dma.vmem_to_hbm [thread:$0]  %s662, 128, %s659, %s647
        $region48: #{tpu_custom_call.1} parent=31 // pred_fallthru
          _
      $region32: #{tpu_custom_call.1} parent=5 // pred_fallthru
        _
      %p665 = scmp.le.s32.totalorder 2, %s12
      // Predicated region
      $region49: #{tpu_custom_call.1} parent=5 // pred_check
        %p666 = pneg %p665
      $region50: #{tpu_custom_call.1} parent=5 // pred_check_branch
        %668 = sbr.rel (%p666) target = $region52
      $region51: #{tpu_custom_call.1} parent=5 // pred_region
        %s669 = ssub.s32 %s12, 2
        // Predicated region
        $region53: #{tpu_custom_call.1} parent=51 // pred_check
          %p670 = pneg %p127
        $region54: #{tpu_custom_call.1} parent=51 // pred_check_branch
          %672 = sbr.rel (%p670) target = $region56
        $region55: #{tpu_custom_call.1} parent=51 // pred_region
          %s673 = sand.u32 %s112, 1
          %s674 = scalar_lea.sflag [#allocation6], %s673
          %s675 = sand.u32 %s112, 1
          %s676 = smul.addr %s675, 8
          %s677 = scalar_lea.vmem [#allocation5], %s676
          %678 = dma.done %s674, 128
        $region56: #{tpu_custom_call.1} parent=51 // pred_fallthru
          _
      $region52: #{tpu_custom_call.1} parent=5 // pred_fallthru
        _
    $region6: #{tpu_custom_call.1} parent=1 // loop_footer
      %s16 = sadd.s32 1, %s12
    $region7: #{tpu_custom_call.1} parent=1 // loop_footer_branch
      %11 = sbr.rel target = $region3
    $region8: #{tpu_custom_call.1} parent=1 // loop_exit
      _
    %679 = vsyncpa [#allocation6], 1
    %s680 = scalar_lea.sflag [#allocation6], 1
    %681 = vsyncpa %s680, 1

</llo_original>
